<compile_context>
chip_gen: v5e
topology: v5e:2x2
jax: 0.10.0
libtpu: 0.0.40
codegen_flags: <defaults>
</compile_context>

<pallas_src>
import functools

import numpy as np

import jax
import jax.numpy as jnp
from jax import lax
from jax.experimental import pallas as pl
from jax.experimental.pallas import tpu as pltpu

TEMPERATURE = 0.1
GAMMA = 1.5          # hard-coded below via sqrt / the fitted polynomial
ALPHA = 0.5          # note: (1-ALPHA) weights y==0, ALPHA weights y==1
_LOG_CLAMP = -100.0  # PyTorch BCELoss clamps log terms at -100
_NEG_INF = -1e30     # additive mask for padded kv columns

# Degree-6 least-squares fit of sigmoid(p)**1.5 on p in [0, 1] (max abs error
# ~1e-7).  Keeps the per-element focal weight on the VPU instead of the EUP.
_p_grid = np.linspace(0.0, 1.0, 4097)
_SIG15_COEFFS = tuple(
    float(c)
    for c in np.polyfit(_p_grid, (1.0 / (1.0 + np.exp(-_p_grid))) ** 1.5, 6))
del _p_grid


def _sig15_poly(p):
    """Polynomial approx of sigmoid(p)**1.5 for p in [0, 1]; Horner on the VPU."""
    c = _SIG15_COEFFS
    r = c[0] * p + c[1]
    for ci in c[2:]:
        r = r * p + ci
    return r


def _tile_partial(q, kv_full, kv_diag, row_start, *, bs_valid, needs_mask):
    """Sum of the focal BCE over the rows softmax(q @ kv_full.T / T) against a
    one-hot target whose hot column for local row r is (row_start + r).
    Returns a (1, 1) f32 partial sum."""
    tm = q.shape[0]
    bs_p = kv_full.shape[0]
    inv_t = jnp.float32(1.0 / TEMPERATURE)

    # (tm, d) x (bs_p, d) contracted on d -> (tm, bs_p): MXU, f32 accumulation,
    # second operand used untransposed (no (bs,bs) XLU transpose anywhere).
    x = lax.dot_general(q, kv_full, (((1,), (1,)), ((), ())),
                        preferred_element_type=jnp.float32) * inv_t

    if needs_mask:  # padded kv columns must not enter the softmax
        col = lax.broadcasted_iota(jnp.int32, (tm, bs_p), 1)
        x = jnp.where(col < bs_valid, x, _NEG_INF)

    # Row softmax.
    m = jnp.max(x, axis=-1, keepdims=True)                       # (tm, 1)
    e = jnp.exp(x - m)                                           # (tm, bs_p)
    ssum = jnp.sum(e, axis=-1, keepdims=True)                    # (tm, 1)
    inv_sum = pl.reciprocal(ssum, approx=False)                  # per-row only
    p = jnp.minimum(e * inv_sum, 1.0)                            # (tm, bs_p)

    # y == 0 branch evaluated everywhere:
    #   bce0 = -clamp(log(1-p)); weight = (1-alpha) * sigmoid(p)**1.5 (poly).
    log1mp = jnp.maximum(jnp.log(1.0 - p), _LOG_CLAMP)
    loss0 = (-log1mp) * ((1.0 - ALPHA) * _sig15_poly(p))
    row_tot = jnp.sum(loss0, axis=-1, keepdims=True)             # (tm, 1)

    # Diagonal (y == 1) correction, O(tm) work: the diagonal score of local row
    # r is q[r] . kv[row_start + r], recomputed as a row-wise dot so no
    # full-width (tm, bs_p) select/reduce passes are needed.  (The recomputed
    # score differs from the MXU value by ~1 ulp; negligible on a mean loss.)
    x_d = jnp.sum(q.astype(jnp.float32) * kv_diag.astype(jnp.float32),
                  axis=-1, keepdims=True) * inv_t                # (tm, 1)
    e_d = jnp.exp(x_d - m)
    p_d = jnp.minimum(e_d * inv_sum, 1.0)
    log1mp_d = jnp.maximum(jnp.log(1.0 - p_d), _LOG_CLAMP)
    loss0_d = (-log1mp_d) * ((1.0 - ALPHA) * _sig15_poly(p_d))

    # log(p_diag) via log-softmax: tm logs, accurate for tiny p.
    logp_d = jnp.maximum(x_d - m - jnp.log(ssum), _LOG_CLAMP)
    one_m = 1.0 - jax.nn.sigmoid(p_d)            # exact path: only tm elements
    loss1_d = (-logp_d) * (ALPHA * (one_m * jnp.sqrt(one_m)))
    row_tot = row_tot + (loss1_d - loss0_d)

    if needs_mask:  # padded q rows contribute nothing
        ridx = lax.broadcasted_iota(jnp.int32, (tm, 1), 0) + row_start
        row_tot = jnp.where(ridx < bs_valid, row_tot, 0.0)

    return jnp.sum(row_tot, axis=0, keepdims=True)               # (1, 1)


def _focal_infonce_kernel(q_ref, kv_ref, out_ref, *, tm, bs_valid, needs_mask):
    t = pl.program_id(1)
    row_start = pl.multiple_of(t * tm, tm)

    q = q_ref[...]                                   # (tm, d)
    kv_full = kv_ref[...]                            # (bs_p, d)
    kv_diag = kv_ref[pl.ds(row_start, tm), :]        # (tm, d) rows of this tile

    part = _tile_partial(q, kv_full, kv_diag, row_start,
                         bs_valid=bs_valid, needs_mask=needs_mask)
    # Lane-dense (8, 128) store of the scalar partial; reduced outside.
    out_ref[...] = jnp.broadcast_to(part, (8, 128))


# ----------------------------------------------------------------------------
# Wrapper: generation-aware tiling, padding/masking, per-tile partial outputs.
# ----------------------------------------------------------------------------

def _round_up(x, m):
    return ((x + m - 1) // m) * m


def _vmem_capacity_bytes():
    try:
        return int(pltpu.get_tpu_info().vmem_capacity_bytes)
    except Exception:
        return 64 << 20  # conservative (v7x-sized) fallback


def _vmem_need_bytes(tm, bs_p, d, itemsize):
    kv = bs_p * d * itemsize          # resident kv slab (single-buffered)
    q = 2 * tm * d * itemsize         # double-buffered q tile
    diag = 2 * tm * d * 4             # f32 temporaries of the row-wise dot
    tmps = 10 * tm * bs_p * 4         # live (tm, bs_p) f32 temporaries
    return kv + q + diag + tmps + (4 << 20)


def _pick_row_tile(bs, d, itemsize, budget, target):
    for cand in (256, 128, 64, 32, 16, 8):
        if cand > target:
            continue
        tm = min(cand, _round_up(bs, 8))
        if _vmem_need_bytes(tm, _round_up(bs, tm), d, itemsize) <= budget:
            return tm
    return 8  # may spill for extreme d; see TODO(synk) about streaming kv


def _build_pallas_call(kernel, d, bs_p, n_tiles, tm, vmem_limit,
                       single_buffer_kv):
    kv_kwargs = {}
    if single_buffer_kv:
        # The kv slab only changes when the direction flips; a single buffer
        # halves its VMEM footprint.
        kv_kwargs["pipeline_mode"] = pl.Buffered(1)
    in_specs = [
        # q rows of this tile for direction `di` (im for loss_im, s for loss_sen)
        pl.BlockSpec((None, tm, d), lambda di, t: (di, t, 0)),
        # full kv slab for the opposite direction; resident across tiles
        pl.BlockSpec((None, bs_p, d), lambda di, t: (1 - di, 0, 0), **kv_kwargs),
    ]
    out_specs = pl.BlockSpec((None, None, 8, 128), lambda di, t: (di, t, 0, 0))
    return pl.pallas_call(
        kernel,
        out_shape=jax.ShapeDtypeStruct((2, n_tiles, 8, 128), jnp.float32),
        grid=(2, n_tiles),
        in_specs=in_specs,
        out_specs=out_specs,
        compiler_params=pltpu.CompilerParams(
            # Per-(direction, tile) partial outputs -> both axes are parallel,
            # letting v7x split the grid across its two TensorCores.
            dimension_semantics=("parallel", "parallel"),
            vmem_limit_bytes=vmem_limit,
        ),
    )


def focal_infonce(im, s, *, cast_to_bf16=False):
    """(mean(focal_bce(softmax(im@s.T/T), I)) +
        mean(focal_bce(softmax(s@im.T/T), I))) / 2."""
    bs, d = im.shape
    assert s.shape == (bs, d)

    if cast_to_bf16:
        # Optional: native MXU dtype + half the resident input VMEM, at the
        # cost of ~3 decimal digits in the scores (off by default to preserve
        # the reference f32 numerics).
        im = im.astype(jnp.bfloat16)
        s = s.astype(jnp.bfloat16)
    itemsize = jnp.dtype(im.dtype).itemsize

    cap = _vmem_capacity_bytes()
    budget = int(0.8 * cap)
    # Generation-aware row-tile target: 256 on 128-MiB-VMEM parts (v5e/v6e),
    # 128 (64 for very large batches) on v7x's 64 MiB.
    target = 256 if cap > (96 << 20) else (64 if bs >= 4096 else 128)

    tm = _pick_row_tile(bs, d, itemsize, budget, target)
    bs_p = _round_up(bs, tm)
    n_tiles = bs_p // tm
    needs_mask = bs_p != bs

    if needs_mask:
        pad = bs_p - bs
        im = jnp.pad(im, ((0, pad), (0, 0)))
        s = jnp.pad(s, ((0, pad), (0, 0)))

    # dir 0: q = im rows, kv = s (loss_im);  dir 1: q = s rows, kv = im.
    x2 = jnp.stack([im, s], axis=0)                   # (2, bs_p, d)

    vmem_limit = int(min(max(_vmem_need_bytes(tm, bs_p, d, itemsize), 32 << 20),
                         max(budget, 32 << 20)))

    kernel = functools.partial(_focal_infonce_kernel, tm=tm, bs_valid=bs,
                               needs_mask=needs_mask)

    try:
        call = _build_pallas_call(kernel, d, bs_p, n_tiles, tm, vmem_limit,
                                  single_buffer_kv=True)
        partials = call(x2, x2)
    except Exception:
        # Fallback for JAX builds without single-buffer pipeline_mode support:
        # identical kernel, default double-buffered kv (slightly more VMEM).
        fb_limit = int(min(vmem_limit + bs_p * d * itemsize,
                           max(budget, 32 << 20)))
        call = _build_pallas_call(kernel, d, bs_p, n_tiles, tm, fb_limit,
                                  single_buffer_kv=False)
        partials = call(x2, x2)

    # (sum_im + sum_sen) / (2 * bs^2) == (mean_im + mean_sen) / 2
    return partials[:, :, 0, 0].sum() * jnp.float32(0.5 / (bs * bs))


# ----------------------------------------------------------------------------
# Ground-truth reference (float64 NumPy port of the PyTorch forward).
# ----------------------------------------------------------------------------

def _reference_loss_np(im, s, temperature=TEMPERATURE, gamma=GAMMA, alpha=ALPHA):
    im = np.asarray(im, dtype=np.float64)
    s = np.asarray(s, dtype=np.float64)
    scores = im @ s.T
    bs = scores.shape[0]
    gt = np.eye(bs)

    def softmax(z):
        z = z - z.max(axis=-1, keepdims=True)
        e = np.exp(z)
        return e / e.sum(axis=-1, keepdims=True)

    def focal_bce_mean(pred, true):
        logp = np.maximum(np.log(pred), -100.0)
        log1mp = np.maximum(np.log(1.0 - pred), -100.0)
        bce = -(true * logp + (1.0 - true) * log1mp)
        prob = 1.0 / (1.0 + np.exp(-pred))
        p_t = true * prob + (1.0 - true) * (1.0 - prob)
        alpha_f = true * alpha + (1.0 - true) * (1.0 - alpha)
        return float(np.mean(bce * alpha_f * (1.0 - p_t) ** gamma))

    loss_im = focal_bce_mean(softmax(scores / temperature), gt)
    loss_sen = focal_bce_mean(softmax(scores.T / temperature), gt)
    return 0.5 * (loss_im + loss_sen)


if __name__ == "__main__":
    key = jax.random.PRNGKey(0)
    k_im, k_s = jax.random.split(key)
    bs, d = 8, 32
    im = jax.random.normal(k_im, (bs, d), dtype=jnp.float32)
    s = jax.random.normal(k_s, (bs, d), dtype=jnp.float32)
    # L2-normalized embeddings (the usual InfoNCE setting); also keeps the
    # self-check away from the fully saturated-softmax regime where f32 matmul
    # reassociation alone would dominate any comparison.
    im = im / jnp.linalg.norm(im, axis=-1, keepdims=True)
    s = s / jnp.linalg.norm(s, axis=-1, keepdims=True)

    loss = jax.block_until_ready(focal_infonce(im, s))

    ref = _reference_loss_np(im, s)
    assert abs(float(loss) - ref) <= 5e-2 * abs(ref) + 1e-4, (float(loss), ref)
    print("KERNEL_OK")
</pallas_src>

<mosaic_0001>
module attributes {stable_mosaic.version = 11 : i64} {
  func.func @_focal_infonce_kernel(%arg0: i32, %arg1: i32, %arg2: memref<1x8x32xf32, #tpu.memory_space<vmem>>, %arg3: memref<1x8x32xf32, #tpu.memory_space<vmem>>, %arg4: memref<1x1x8x128xf32, #tpu.memory_space<vmem>>) attributes {dimension_semantics = [#tpu.dimension_semantics<parallel>, #tpu.dimension_semantics<parallel>], iteration_bounds = array<i64: 2, 1>, scalar_prefetch = 0 : i64, scratch_operands = 0 : i64, tpu.core_type = #tpu.core_type<tc>, window_params = [{transform_indices = @transform_0, window_bounds = array<i64: 1, 8, 32>}, {pipeline_mode = #tpu.pipeline_mode<synchronous>, transform_indices = @transform_1, window_bounds = array<i64: 1, 8, 32>}, {transform_indices = @transform_2, window_bounds = array<i64: 1, 1, 8, 128>}]} {
    %c8_i32 = arith.constant 8 : i32
    %0 = arith.muli %arg1, %c8_i32 : i32
    %1 = tpu.assume_multiple %0, 8 : i32
    %c0 = arith.constant 0 : index
    %c0_0 = arith.constant 0 : index
    %c0_1 = arith.constant 0 : index
    %2 = vector.load %arg2[%c0, %c0_0, %c0_1] : memref<1x8x32xf32, #tpu.memory_space<vmem>>, vector<1x8x32xf32>
    %3 = vector.shape_cast %2 : vector<1x8x32xf32> to vector<8x32xf32>
    %c0_2 = arith.constant 0 : index
    %c0_3 = arith.constant 0 : index
    %c0_4 = arith.constant 0 : index
    %4 = vector.load %arg3[%c0_2, %c0_3, %c0_4] : memref<1x8x32xf32, #tpu.memory_space<vmem>>, vector<1x8x32xf32>
    %5 = vector.shape_cast %4 : vector<1x8x32xf32> to vector<8x32xf32>
    %c0_5 = arith.constant 0 : index
    %6 = arith.index_cast %1 : i32 to index
    %c0_6 = arith.constant 0 : index
    %7 = vector.load %arg3[%c0_5, %6, %c0_6] : memref<1x8x32xf32, #tpu.memory_space<vmem>>, vector<1x8x32xf32>
    %8 = vector.shape_cast %7 : vector<1x8x32xf32> to vector<8x32xf32>
    %cst = arith.constant dense<0.000000e+00> : vector<8x8xf32>
    %9 = tpu.matmul %3, %5, %cst {dimension_numbers = #tpu.dot_dimension_numbers<[1], [1], [0], [0], [0, 0, 1, 0], [], []>} : vector<8x32xf32>, vector<8x32xf32>, vector<8x8xf32> -> vector<8x8xf32>
    %cst_7 = arith.constant 1.000000e+01 : f32
    %10 = vector.broadcast %cst_7 : f32 to vector<8x8xf32>
    %11 = arith.mulf %9, %10 : vector<8x8xf32>
    %cst_8 = arith.constant dense<0xFF800000> : vector<8xf32>
    %12 = vector.multi_reduction <maximumf>, %11, %cst_8 [1] : vector<8x8xf32> to vector<8xf32>
    %13 = vector.shape_cast %12 : vector<8xf32> to vector<8x1xf32>
    %14 = vector.broadcast %13 : vector<8x1xf32> to vector<8x8xf32>
    %15 = arith.subf %11, %14 : vector<8x8xf32>
    %16 = math.exp %15 : vector<8x8xf32>
    %cst_9 = arith.constant dense<0.000000e+00> : vector<8xf32>
    %17 = vector.multi_reduction <add>, %16, %cst_9 [1] : vector<8x8xf32> to vector<8xf32>
    %18 = vector.shape_cast %17 : vector<8xf32> to vector<8x1xf32>
    %19 = tpu.reciprocal %18 : vector<8x1xf32> -> vector<8x1xf32>
    %20 = vector.broadcast %19 : vector<8x1xf32> to vector<8x8xf32>
    %21 = arith.mulf %16, %20 : vector<8x8xf32>
    %cst_10 = arith.constant 1.000000e+00 : f32
    %22 = vector.broadcast %cst_10 : f32 to vector<8x8xf32>
    %23 = arith.minimumf %21, %22 : vector<8x8xf32>
    %cst_11 = arith.constant 1.000000e+00 : f32
    %24 = vector.broadcast %cst_11 : f32 to vector<8x8xf32>
    %25 = arith.subf %24, %23 : vector<8x8xf32>
    %26 = math.log %25 : vector<8x8xf32>
    %cst_12 = arith.constant -1.000000e+02 : f32
    %27 = vector.broadcast %cst_12 : f32 to vector<8x8xf32>
    %28 = arith.maximumf %26, %27 : vector<8x8xf32>
    %cst_13 = arith.constant 0.000000e+00 : f32
    %29 = vector.broadcast %cst_13 : f32 to vector<8x8xf32>
    %30 = arith.subf %29, %28 : vector<8x8xf32>
    %cst_14 = arith.constant -5.24984964E-4 : f32
    %31 = vector.broadcast %cst_14 : f32 to vector<8x8xf32>
    %32 = arith.mulf %31, %23 : vector<8x8xf32>
    %cst_15 = arith.constant 0.00432658335 : f32
    %33 = vector.broadcast %cst_15 : f32 to vector<8x8xf32>
    %34 = arith.addf %32, %33 : vector<8x8xf32>
    %35 = arith.mulf %34, %23 : vector<8x8xf32>
    %cst_16 = arith.constant -0.00604114495 : f32
    %36 = vector.broadcast %cst_16 : f32 to vector<8x8xf32>
    %37 = arith.addf %35, %36 : vector<8x8xf32>
    %38 = arith.mulf %37, %23 : vector<8x8xf32>
    %cst_17 = arith.constant -0.0244959667 : f32
    %39 = vector.broadcast %cst_17 : f32 to vector<8x8xf32>
    %40 = arith.addf %38, %39 : vector<8x8xf32>
    %41 = arith.mulf %40, %23 : vector<8x8xf32>
    %cst_18 = arith.constant 0.033082068 : f32
    %42 = vector.broadcast %cst_18 : f32 to vector<8x8xf32>
    %43 = arith.addf %41, %42 : vector<8x8xf32>
    %44 = arith.mulf %43, %23 : vector<8x8xf32>
    %cst_19 = arith.constant 0.26516965 : f32
    %45 = vector.broadcast %cst_19 : f32 to vector<8x8xf32>
    %46 = arith.addf %44, %45 : vector<8x8xf32>
    %47 = arith.mulf %46, %23 : vector<8x8xf32>
    %cst_20 = arith.constant 0.353553325 : f32
    %48 = vector.broadcast %cst_20 : f32 to vector<8x8xf32>
    %49 = arith.addf %47, %48 : vector<8x8xf32>
    %cst_21 = arith.constant 5.000000e-01 : f32
    %50 = vector.broadcast %cst_21 : f32 to vector<8x8xf32>
    %51 = arith.mulf %50, %49 : vector<8x8xf32>
    %52 = arith.mulf %30, %51 : vector<8x8xf32>
    %cst_22 = arith.constant dense<0.000000e+00> : vector<8xf32>
    %53 = vector.multi_reduction <add>, %52, %cst_22 [1] : vector<8x8xf32> to vector<8xf32>
    %54 = vector.shape_cast %53 : vector<8xf32> to vector<8x1xf32>
    %55 = arith.mulf %3, %8 : vector<8x32xf32>
    %cst_23 = arith.constant dense<0.000000e+00> : vector<8xf32>
    %56 = vector.multi_reduction <add>, %55, %cst_23 [1] : vector<8x32xf32> to vector<8xf32>
    %57 = vector.shape_cast %56 : vector<8xf32> to vector<8x1xf32>
    %cst_24 = arith.constant 1.000000e+01 : f32
    %58 = vector.broadcast %cst_24 : f32 to vector<8x1xf32>
    %59 = arith.mulf %57, %58 : vector<8x1xf32>
    %60 = arith.subf %59, %13 : vector<8x1xf32>
    %61 = math.exp %60 : vector<8x1xf32>
    %62 = arith.mulf %61, %19 : vector<8x1xf32>
    %cst_25 = arith.constant 1.000000e+00 : f32
    %63 = vector.broadcast %cst_25 : f32 to vector<8x1xf32>
    %64 = arith.minimumf %62, %63 : vector<8x1xf32>
    %cst_26 = arith.constant 1.000000e+00 : f32
    %65 = vector.broadcast %cst_26 : f32 to vector<8x1xf32>
    %66 = arith.subf %65, %64 : vector<8x1xf32>
    %67 = math.log %66 : vector<8x1xf32>
    %cst_27 = arith.constant -1.000000e+02 : f32
    %68 = vector.broadcast %cst_27 : f32 to vector<8x1xf32>
    %69 = arith.maximumf %67, %68 : vector<8x1xf32>
    %cst_28 = arith.constant 0.000000e+00 : f32
    %70 = vector.broadcast %cst_28 : f32 to vector<8x1xf32>
    %71 = arith.subf %70, %69 : vector<8x1xf32>
    %cst_29 = arith.constant -5.24984964E-4 : f32
    %72 = vector.broadcast %cst_29 : f32 to vector<8x1xf32>
    %73 = arith.mulf %72, %64 : vector<8x1xf32>
    %cst_30 = arith.constant 0.00432658335 : f32
    %74 = vector.broadcast %cst_30 : f32 to vector<8x1xf32>
    %75 = arith.addf %73, %74 : vector<8x1xf32>
    %76 = arith.mulf %75, %64 : vector<8x1xf32>
    %cst_31 = arith.constant -0.00604114495 : f32
    %77 = vector.broadcast %cst_31 : f32 to vector<8x1xf32>
    %78 = arith.addf %76, %77 : vector<8x1xf32>
    %79 = arith.mulf %78, %64 : vector<8x1xf32>
    %cst_32 = arith.constant -0.0244959667 : f32
    %80 = vector.broadcast %cst_32 : f32 to vector<8x1xf32>
    %81 = arith.addf %79, %80 : vector<8x1xf32>
    %82 = arith.mulf %81, %64 : vector<8x1xf32>
    %cst_33 = arith.constant 0.033082068 : f32
    %83 = vector.broadcast %cst_33 : f32 to vector<8x1xf32>
    %84 = arith.addf %82, %83 : vector<8x1xf32>
    %85 = arith.mulf %84, %64 : vector<8x1xf32>
    %cst_34 = arith.constant 0.26516965 : f32
    %86 = vector.broadcast %cst_34 : f32 to vector<8x1xf32>
    %87 = arith.addf %85, %86 : vector<8x1xf32>
    %88 = arith.mulf %87, %64 : vector<8x1xf32>
    %cst_35 = arith.constant 0.353553325 : f32
    %89 = vector.broadcast %cst_35 : f32 to vector<8x1xf32>
    %90 = arith.addf %88, %89 : vector<8x1xf32>
    %cst_36 = arith.constant 5.000000e-01 : f32
    %91 = vector.broadcast %cst_36 : f32 to vector<8x1xf32>
    %92 = arith.mulf %91, %90 : vector<8x1xf32>
    %93 = arith.mulf %71, %92 : vector<8x1xf32>
    %94 = arith.subf %59, %13 : vector<8x1xf32>
    %95 = math.log %18 : vector<8x1xf32>
    %96 = arith.subf %94, %95 : vector<8x1xf32>
    %cst_37 = arith.constant -1.000000e+02 : f32
    %97 = vector.broadcast %cst_37 : f32 to vector<8x1xf32>
    %98 = arith.maximumf %96, %97 : vector<8x1xf32>
    %99 = arith.negf %64 : vector<8x1xf32>
    %100 = math.exp %99 : vector<8x1xf32>
    %cst_38 = arith.constant 1.000000e+00 : f32
    %101 = vector.broadcast %cst_38 : f32 to vector<8x1xf32>
    %102 = arith.addf %101, %100 : vector<8x1xf32>
    %103 = arith.divf %101, %102 : vector<8x1xf32>
    %cst_39 = arith.constant 1.000000e+00 : f32
    %104 = vector.broadcast %cst_39 : f32 to vector<8x1xf32>
    %105 = arith.subf %104, %103 : vector<8x1xf32>
    %cst_40 = arith.constant 0.000000e+00 : f32
    %106 = vector.broadcast %cst_40 : f32 to vector<8x1xf32>
    %107 = arith.subf %106, %98 : vector<8x1xf32>
    %108 = math.sqrt %105 : vector<8x1xf32>
    %109 = arith.mulf %105, %108 : vector<8x1xf32>
    %cst_41 = arith.constant 5.000000e-01 : f32
    %110 = vector.broadcast %cst_41 : f32 to vector<8x1xf32>
    %111 = arith.mulf %110, %109 : vector<8x1xf32>
    %112 = arith.mulf %107, %111 : vector<8x1xf32>
    %113 = arith.subf %112, %93 : vector<8x1xf32>
    %114 = arith.addf %54, %113 : vector<8x1xf32>
    %cst_42 = arith.constant dense<0.000000e+00> : vector<1xf32>
    %115 = vector.multi_reduction <add>, %114, %cst_42 [0] : vector<8x1xf32> to vector<1xf32>
    %116 = vector.shape_cast %115 : vector<1xf32> to vector<1x1xf32>
    %117 = vector.shape_cast %116 : vector<1x1xf32> to vector<1x1xf32>
    %118 = vector.broadcast %117 : vector<1x1xf32> to vector<8x128xf32>
    %c0_43 = arith.constant 0 : index
    %c0_44 = arith.constant 0 : index
    %c0_45 = arith.constant 0 : index
    %c0_46 = arith.constant 0 : index
    %119 = vector.load %arg4[%c0_43, %c0_44, %c0_45, %c0_46] : memref<1x1x8x128xf32, #tpu.memory_space<vmem>>, vector<1x1x8x128xf32>
    %120 = vector.shape_cast %119 : vector<1x1x8x128xf32> to vector<8x128xf32>
    %121 = vector.shape_cast %118 : vector<8x128xf32> to vector<1x1x8x128xf32>
    tpu.vector_store %arg4[%c0_43, %c0_44, %c0_45, %c0_46], %121 {strides = array<i32>} : memref<1x1x8x128xf32, #tpu.memory_space<vmem>>, vector<1x1x8x128xf32>,
    return
  }
  func.func @transform_0(%arg0: i32, %arg1: i32) -> (i32, i32, i32) {
    %c0_i32 = arith.constant 0 : i32
    %c0_i32_0 = arith.constant 0 : i32
    return %arg0, %arg1, %c0_i32 : i32, i32, i32
  }
  func.func @transform_1(%arg0: i32, %arg1: i32) -> (i32, i32, i32) {
    %c1_i32 = arith.constant 1 : i32
    %0 = arith.subi %c1_i32, %arg0 : i32
    %c0_i32 = arith.constant 0 : i32
    %c0_i32_0 = arith.constant 0 : i32
    %c0_i32_1 = arith.constant 0 : i32
    return %0, %c0_i32, %c0_i32_0 : i32, i32, i32
  }
  func.func @transform_2(%arg0: i32, %arg1: i32) -> (i32, i32, i32, i32) {
    %c0_i32 = arith.constant 0 : i32
    %c0_i32_0 = arith.constant 0 : i32
    %c0_i32_1 = arith.constant 0 : i32
    return %arg0, %arg1, %c0_i32, %c0_i32_0 : i32, i32, i32, i32
  }
}

module attributes {stable_mosaic.version = 11 : i64} {
  func.func @_focal_infonce_kernel(%arg0: i32, %arg1: i32, %arg2: memref<1x8x32xf32, #tpu.memory_space<vmem>>, %arg3: memref<1x8x32xf32, #tpu.memory_space<vmem>>, %arg4: memref<1x1x8x128xf32, #tpu.memory_space<vmem>>) attributes {dimension_semantics = [#tpu.dimension_semantics<parallel>, #tpu.dimension_semantics<parallel>], iteration_bounds = array<i64: 2, 1>, scalar_prefetch = 0 : i64, scratch_operands = 0 : i64, tpu.core_type = #tpu.core_type<tc>, window_params = [{transform_indices = @transform_0, window_bounds = array<i64: 1, 8, 32>}, {transform_indices = @transform_1, window_bounds = array<i64: 1, 8, 32>}, {transform_indices = @transform_2, window_bounds = array<i64: 1, 1, 8, 128>}]} {
    %c8_i32 = arith.constant 8 : i32
    %0 = arith.muli %arg1, %c8_i32 : i32
    %1 = tpu.assume_multiple %0, 8 : i32
    %c0 = arith.constant 0 : index
    %c0_0 = arith.constant 0 : index
    %c0_1 = arith.constant 0 : index
    %2 = vector.load %arg2[%c0, %c0_0, %c0_1] : memref<1x8x32xf32, #tpu.memory_space<vmem>>, vector<1x8x32xf32>
    %3 = vector.shape_cast %2 : vector<1x8x32xf32> to vector<8x32xf32>
    %c0_2 = arith.constant 0 : index
    %c0_3 = arith.constant 0 : index
    %c0_4 = arith.constant 0 : index
    %4 = vector.load %arg3[%c0_2, %c0_3, %c0_4] : memref<1x8x32xf32, #tpu.memory_space<vmem>>, vector<1x8x32xf32>
    %5 = vector.shape_cast %4 : vector<1x8x32xf32> to vector<8x32xf32>
    %c0_5 = arith.constant 0 : index
    %6 = arith.index_cast %1 : i32 to index
    %c0_6 = arith.constant 0 : index
    %7 = vector.load %arg3[%c0_5, %6, %c0_6] : memref<1x8x32xf32, #tpu.memory_space<vmem>>, vector<1x8x32xf32>
    %8 = vector.shape_cast %7 : vector<1x8x32xf32> to vector<8x32xf32>
    %cst = arith.constant dense<0.000000e+00> : vector<8x8xf32>
    %9 = tpu.matmul %3, %5, %cst {dimension_numbers = #tpu.dot_dimension_numbers<[1], [1], [0], [0], [0, 0, 1, 0], [], []>} : vector<8x32xf32>, vector<8x32xf32>, vector<8x8xf32> -> vector<8x8xf32>
    %cst_7 = arith.constant 1.000000e+01 : f32
    %10 = vector.broadcast %cst_7 : f32 to vector<8x8xf32>
    %11 = arith.mulf %9, %10 : vector<8x8xf32>
    %cst_8 = arith.constant dense<0xFF800000> : vector<8xf32>
    %12 = vector.multi_reduction <maximumf>, %11, %cst_8 [1] : vector<8x8xf32> to vector<8xf32>
    %13 = vector.shape_cast %12 : vector<8xf32> to vector<8x1xf32>
    %14 = vector.broadcast %13 : vector<8x1xf32> to vector<8x8xf32>
    %15 = arith.subf %11, %14 : vector<8x8xf32>
    %16 = math.exp %15 : vector<8x8xf32>
    %cst_9 = arith.constant dense<0.000000e+00> : vector<8xf32>
    %17 = vector.multi_reduction <add>, %16, %cst_9 [1] : vector<8x8xf32> to vector<8xf32>
    %18 = vector.shape_cast %17 : vector<8xf32> to vector<8x1xf32>
    %19 = tpu.reciprocal %18 : vector<8x1xf32> -> vector<8x1xf32>
    %20 = vector.broadcast %19 : vector<8x1xf32> to vector<8x8xf32>
    %21 = arith.mulf %16, %20 : vector<8x8xf32>
    %cst_10 = arith.constant 1.000000e+00 : f32
    %22 = vector.broadcast %cst_10 : f32 to vector<8x8xf32>
    %23 = arith.minimumf %21, %22 : vector<8x8xf32>
    %cst_11 = arith.constant 1.000000e+00 : f32
    %24 = vector.broadcast %cst_11 : f32 to vector<8x8xf32>
    %25 = arith.subf %24, %23 : vector<8x8xf32>
    %26 = math.log %25 : vector<8x8xf32>
    %cst_12 = arith.constant -1.000000e+02 : f32
    %27 = vector.broadcast %cst_12 : f32 to vector<8x8xf32>
    %28 = arith.maximumf %26, %27 : vector<8x8xf32>
    %cst_13 = arith.constant 0.000000e+00 : f32
    %29 = vector.broadcast %cst_13 : f32 to vector<8x8xf32>
    %30 = arith.subf %29, %28 : vector<8x8xf32>
    %cst_14 = arith.constant -5.24984964E-4 : f32
    %31 = vector.broadcast %cst_14 : f32 to vector<8x8xf32>
    %32 = arith.mulf %31, %23 : vector<8x8xf32>
    %cst_15 = arith.constant 0.00432658335 : f32
    %33 = vector.broadcast %cst_15 : f32 to vector<8x8xf32>
    %34 = arith.addf %32, %33 : vector<8x8xf32>
    %35 = arith.mulf %34, %23 : vector<8x8xf32>
    %cst_16 = arith.constant -0.00604114495 : f32
    %36 = vector.broadcast %cst_16 : f32 to vector<8x8xf32>
    %37 = arith.addf %35, %36 : vector<8x8xf32>
    %38 = arith.mulf %37, %23 : vector<8x8xf32>
    %cst_17 = arith.constant -0.0244959667 : f32
    %39 = vector.broadcast %cst_17 : f32 to vector<8x8xf32>
    %40 = arith.addf %38, %39 : vector<8x8xf32>
    %41 = arith.mulf %40, %23 : vector<8x8xf32>
    %cst_18 = arith.constant 0.033082068 : f32
    %42 = vector.broadcast %cst_18 : f32 to vector<8x8xf32>
    %43 = arith.addf %41, %42 : vector<8x8xf32>
    %44 = arith.mulf %43, %23 : vector<8x8xf32>
    %cst_19 = arith.constant 0.26516965 : f32
    %45 = vector.broadcast %cst_19 : f32 to vector<8x8xf32>
    %46 = arith.addf %44, %45 : vector<8x8xf32>
    %47 = arith.mulf %46, %23 : vector<8x8xf32>
    %cst_20 = arith.constant 0.353553325 : f32
    %48 = vector.broadcast %cst_20 : f32 to vector<8x8xf32>
    %49 = arith.addf %47, %48 : vector<8x8xf32>
    %cst_21 = arith.constant 5.000000e-01 : f32
    %50 = vector.broadcast %cst_21 : f32 to vector<8x8xf32>
    %51 = arith.mulf %50, %49 : vector<8x8xf32>
    %52 = arith.mulf %30, %51 : vector<8x8xf32>
    %cst_22 = arith.constant dense<0.000000e+00> : vector<8xf32>
    %53 = vector.multi_reduction <add>, %52, %cst_22 [1] : vector<8x8xf32> to vector<8xf32>
    %54 = vector.shape_cast %53 : vector<8xf32> to vector<8x1xf32>
    %55 = arith.mulf %3, %8 : vector<8x32xf32>
    %cst_23 = arith.constant dense<0.000000e+00> : vector<8xf32>
    %56 = vector.multi_reduction <add>, %55, %cst_23 [1] : vector<8x32xf32> to vector<8xf32>
    %57 = vector.shape_cast %56 : vector<8xf32> to vector<8x1xf32>
    %cst_24 = arith.constant 1.000000e+01 : f32
    %58 = vector.broadcast %cst_24 : f32 to vector<8x1xf32>
    %59 = arith.mulf %57, %58 : vector<8x1xf32>
    %60 = arith.subf %59, %13 : vector<8x1xf32>
    %61 = math.exp %60 : vector<8x1xf32>
    %62 = arith.mulf %61, %19 : vector<8x1xf32>
    %cst_25 = arith.constant 1.000000e+00 : f32
    %63 = vector.broadcast %cst_25 : f32 to vector<8x1xf32>
    %64 = arith.minimumf %62, %63 : vector<8x1xf32>
    %cst_26 = arith.constant 1.000000e+00 : f32
    %65 = vector.broadcast %cst_26 : f32 to vector<8x1xf32>
    %66 = arith.subf %65, %64 : vector<8x1xf32>
    %67 = math.log %66 : vector<8x1xf32>
    %cst_27 = arith.constant -1.000000e+02 : f32
    %68 = vector.broadcast %cst_27 : f32 to vector<8x1xf32>
    %69 = arith.maximumf %67, %68 : vector<8x1xf32>
    %cst_28 = arith.constant 0.000000e+00 : f32
    %70 = vector.broadcast %cst_28 : f32 to vector<8x1xf32>
    %71 = arith.subf %70, %69 : vector<8x1xf32>
    %cst_29 = arith.constant -5.24984964E-4 : f32
    %72 = vector.broadcast %cst_29 : f32 to vector<8x1xf32>
    %73 = arith.mulf %72, %64 : vector<8x1xf32>
    %cst_30 = arith.constant 0.00432658335 : f32
    %74 = vector.broadcast %cst_30 : f32 to vector<8x1xf32>
    %75 = arith.addf %73, %74 : vector<8x1xf32>
    %76 = arith.mulf %75, %64 : vector<8x1xf32>
    %cst_31 = arith.constant -0.00604114495 : f32
    %77 = vector.broadcast %cst_31 : f32 to vector<8x1xf32>
    %78 = arith.addf %76, %77 : vector<8x1xf32>
    %79 = arith.mulf %78, %64 : vector<8x1xf32>
    %cst_32 = arith.constant -0.0244959667 : f32
    %80 = vector.broadcast %cst_32 : f32 to vector<8x1xf32>
    %81 = arith.addf %79, %80 : vector<8x1xf32>
    %82 = arith.mulf %81, %64 : vector<8x1xf32>
    %cst_33 = arith.constant 0.033082068 : f32
    %83 = vector.broadcast %cst_33 : f32 to vector<8x1xf32>
    %84 = arith.addf %82, %83 : vector<8x1xf32>
    %85 = arith.mulf %84, %64 : vector<8x1xf32>
    %cst_34 = arith.constant 0.26516965 : f32
    %86 = vector.broadcast %cst_34 : f32 to vector<8x1xf32>
    %87 = arith.addf %85, %86 : vector<8x1xf32>
    %88 = arith.mulf %87, %64 : vector<8x1xf32>
    %cst_35 = arith.constant 0.353553325 : f32
    %89 = vector.broadcast %cst_35 : f32 to vector<8x1xf32>
    %90 = arith.addf %88, %89 : vector<8x1xf32>
    %cst_36 = arith.constant 5.000000e-01 : f32
    %91 = vector.broadcast %cst_36 : f32 to vector<8x1xf32>
    %92 = arith.mulf %91, %90 : vector<8x1xf32>
    %93 = arith.mulf %71, %92 : vector<8x1xf32>
    %94 = arith.subf %59, %13 : vector<8x1xf32>
    %95 = math.log %18 : vector<8x1xf32>
    %96 = arith.subf %94, %95 : vector<8x1xf32>
    %cst_37 = arith.constant -1.000000e+02 : f32
    %97 = vector.broadcast %cst_37 : f32 to vector<8x1xf32>
    %98 = arith.maximumf %96, %97 : vector<8x1xf32>
    %99 = arith.negf %64 : vector<8x1xf32>
    %100 = math.exp %99 : vector<8x1xf32>
    %cst_38 = arith.constant 1.000000e+00 : f32
    %101 = vector.broadcast %cst_38 : f32 to vector<8x1xf32>
    %102 = arith.addf %101, %100 : vector<8x1xf32>
    %103 = arith.divf %101, %102 : vector<8x1xf32>
    %cst_39 = arith.constant 1.000000e+00 : f32
    %104 = vector.broadcast %cst_39 : f32 to vector<8x1xf32>
    %105 = arith.subf %104, %103 : vector<8x1xf32>
    %cst_40 = arith.constant 0.000000e+00 : f32
    %106 = vector.broadcast %cst_40 : f32 to vector<8x1xf32>
    %107 = arith.subf %106, %98 : vector<8x1xf32>
    %108 = math.sqrt %105 : vector<8x1xf32>
    %109 = arith.mulf %105, %108 : vector<8x1xf32>
    %cst_41 = arith.constant 5.000000e-01 : f32
    %110 = vector.broadcast %cst_41 : f32 to vector<8x1xf32>
    %111 = arith.mulf %110, %109 : vector<8x1xf32>
    %112 = arith.mulf %107, %111 : vector<8x1xf32>
    %113 = arith.subf %112, %93 : vector<8x1xf32>
    %114 = arith.addf %54, %113 : vector<8x1xf32>
    %cst_42 = arith.constant dense<0.000000e+00> : vector<1xf32>
    %115 = vector.multi_reduction <add>, %114, %cst_42 [0] : vector<8x1xf32> to vector<1xf32>
    %116 = vector.shape_cast %115 : vector<1xf32> to vector<1x1xf32>
    %117 = vector.shape_cast %116 : vector<1x1xf32> to vector<1x1xf32>
    %118 = vector.broadcast %117 : vector<1x1xf32> to vector<8x128xf32>
    %c0_43 = arith.constant 0 : index
    %c0_44 = arith.constant 0 : index
    %c0_45 = arith.constant 0 : index
    %c0_46 = arith.constant 0 : index
    %119 = vector.load %arg4[%c0_43, %c0_44, %c0_45, %c0_46] : memref<1x1x8x128xf32, #tpu.memory_space<vmem>>, vector<1x1x8x128xf32>
    %120 = vector.shape_cast %119 : vector<1x1x8x128xf32> to vector<8x128xf32>
    %121 = vector.shape_cast %118 : vector<8x128xf32> to vector<1x1x8x128xf32>
    tpu.vector_store %arg4[%c0_43, %c0_44, %c0_45, %c0_46], %121 {strides = array<i32>} : memref<1x1x8x128xf32, #tpu.memory_space<vmem>>, vector<1x1x8x128xf32>,
    return
  }
  func.func @transform_0(%arg0: i32, %arg1: i32) -> (i32, i32, i32) {
    %c0_i32 = arith.constant 0 : i32
    %c0_i32_0 = arith.constant 0 : i32
    return %arg0, %arg1, %c0_i32 : i32, i32, i32
  }
  func.func @transform_1(%arg0: i32, %arg1: i32) -> (i32, i32, i32) {
    %c1_i32 = arith.constant 1 : i32
    %0 = arith.subi %c1_i32, %arg0 : i32
    %c0_i32 = arith.constant 0 : i32
    %c0_i32_0 = arith.constant 0 : i32
    %c0_i32_1 = arith.constant 0 : i32
    return %0, %c0_i32, %c0_i32_0 : i32, i32, i32
  }
  func.func @transform_2(%arg0: i32, %arg1: i32) -> (i32, i32, i32, i32) {
    %c0_i32 = arith.constant 0 : i32
    %c0_i32_0 = arith.constant 0 : i32
    %c0_i32_1 = arith.constant 0 : i32
    return %arg0, %arg1, %c0_i32, %c0_i32_0 : i32, i32, i32, i32
  }
}

</mosaic_0001>

<llo_original>
// kernel: tpu_custom_call.1
$region0: #{tpu_custom_call.1}
  #allocation0 [shape = 'u32[]', space=smem, size = 0x4, offset = 0x4, fixed_abs, tag = 'smem constant byte address 0x4 - core index']
  #allocation1 [shape = 'u32[72,128]{1,0:T(1,128)}', space=vmem, size = 0x9000, scoped, tag = 'internal scratch']
  %s0 = inlined_call_operand.hbm [shape: f32[2,8,32], index: 0, kind: input, shape index: {}]
  %s1 = inlined_call_operand.hbm [shape: f32[2,8,32], index: 1, kind: input, shape index: {}]
  %s2 = inlined_call_operand.hbm [shape: f32[2,1,8,128], index: 2, kind: output, shape index: {}]
  %s3 = sld [smem:[#allocation0]]
  $region49: #{tpu_custom_call.1} parent=0
    _
  %s5 = ssub.s32 1, %s3
  %s6 = scalar_select 0, %s5, %s3
  $region1: #{tpu_custom_call.1} parent=0
    #allocation2 [shape = 'u8[8192]{0}', space=vmem, size = 0x2000, scoped, tag = 'input window, operand 0']
    #allocation3 [shape = 's32[2]{0}', space=sflag, size = 0x8, scoped, tag = 'scoped memory for tpu_custom_call.1']
    #allocation4 [shape = 's32[2]{0}', space=sflag, size = 0x8, scoped, tag = 'scoped memory for tpu_custom_call.1']
    #allocation5 [shape = 'u8[4096]{0}', space=vmem, size = 0x1000, scoped, tag = 'input window, operand 1, single buffered']
    #allocation6 [shape = 's32[1]{0}', space=sflag, size = 0x4, scoped, tag = 'scoped memory for tpu_custom_call.1']
    #allocation7 [shape = 'u8[8192]{0}', space=vmem, size = 0x2000, scoped, tag = 'output window, operand 0']
    %7 = vsyncpa [#allocation3], 0
    %s8 = scalar_lea.sflag [#allocation3], 1
    %9 = vsyncpa %s8, 0
    %10 = vsyncpa [#allocation6], 0
    %11 = vsyncpa [#allocation4], 0
    %s12 = scalar_lea.sflag [#allocation4], 1
    %13 = vsyncpa %s12, 0
    loop: start=0, step=1, limit=4
    $region2: #{tpu_custom_call.1} parent=1 // loop_pre_header
      _
    $region3: #{tpu_custom_call.1} parent=1 // loop_header
      %s15 = sphi 0, %s19
      %p16 = scmp.ge.s32.totalorder %s15, 4
      %s22 = sphi 0, %s34
      %s23 = sphi 0, %s30
      %s24 = sphi 0, %s22
      %s25 = sphi 0, %s23
      %s26 = sphi 0, %s24
      %s27 = sphi 0, %s25
      %s39 = sphi 0, %s41
      %s42 = sphi 0, %s39
      %s43 = sphi 0, %s42
      %s59 = sphi 0, %s43
      %s67 = sphi 0, %s69
      %s70 = sphi 0, %s67
      %s71 = sphi 0, %s70
      %s87 = sphi 0, %s71
      %s95 = sphi 0, %s97
      %s98 = sphi 0, %s95
      %s99 = sphi 0, %s98
      %s115 = sphi 0, %s99
    $region4: #{tpu_custom_call.1} parent=1 // loop_header_branch
      %18 = sbr.rel (%p16) target = $region8
    $region5: #{tpu_custom_call.1} parent=1 // loop_body
      %s20 = ssub.s32 %s15, 1
      %s21 = ssub.s32 %s15, 2
      %s28 = sadd.s32 1, %s23
      %p29 = scmp.ge.s32.totalorder %s28, 1
      %s30 = scalar_select %p29, 0, %s28
      %s31 = sadd.s32 1, %s22
      %s32 = scalar_select %p29, %s31, %s22
      %p33 = scmp.ge.s32.totalorder %s32, 2
      %s34 = scalar_select %p33, 0, %s32
      %s35 = ssub.s32 %s22, %s34
      %s36 = ssub.s32 %s23, %s30
      %s37 = sor.u32 %s35, %s36
      %p38 = scmp.eq.s32.totalorder %s37, 0
      %s40 = sadd.s32 %s39, 1
      %s41 = scalar_select %p38, %s39, %s40
      %p44 = pneg %p38
      %p45 = scmp.eq.s32.totalorder %s15, 1
      %p46 = por %p44, %p45
      %p47 = scmp.ne.s32.totalorder %s39, %s42
      %p48 = scmp.eq.s32.totalorder %s15, 0
      %p49 = por %p47, %p48
      %p50 = scmp.ne.s32.totalorder %s39, %s42
      %p51 = scmp.eq.s32.totalorder %s20, 1
      %p52 = por %p50, %p51
      %p53 = scmp.ne.s32.totalorder %s42, %s43
      %p54 = scmp.eq.s32.totalorder %s20, 0
      %p55 = por %p53, %p54
      %p56 = scmp.ne.s32.totalorder %s42, %s43
      %p57 = scmp.eq.s32.totalorder %s21, 1
      %p58 = por %p56, %p57
      %p60 = scmp.ne.s32.totalorder %s43, %s59
      %p61 = scmp.eq.s32.totalorder %s21, 0
      %p62 = por %p60, %p61
      %s63 = ssub.s32 1, %s22
      %s64 = ssub.s32 1, %s34
      %s65 = ssub.s32 %s63, %s64
      %p66 = scmp.eq.s32.totalorder %s65, 0
      %s68 = sadd.s32 %s67, 1
      %s69 = scalar_select %p66, %s67, %s68
      %p72 = pneg %p66
      %p73 = scmp.eq.s32.totalorder %s15, 1
      %p74 = por %p72, %p73
      %p75 = scmp.ne.s32.totalorder %s67, %s70
      %p76 = scmp.eq.s32.totalorder %s15, 0
      %p77 = por %p75, %p76
      %p78 = scmp.ne.s32.totalorder %s67, %s70
      %p79 = scmp.eq.s32.totalorder %s20, 1
      %p80 = por %p78, %p79
      %p81 = scmp.ne.s32.totalorder %s70, %s71
      %p82 = scmp.eq.s32.totalorder %s20, 0
      %p83 = por %p81, %p82
      %p84 = scmp.ne.s32.totalorder %s70, %s71
      %p85 = scmp.eq.s32.totalorder %s21, 1
      %p86 = por %p84, %p85
      %p88 = scmp.ne.s32.totalorder %s71, %s87
      %p89 = scmp.eq.s32.totalorder %s21, 0
      %p90 = por %p88, %p89
      %s91 = ssub.s32 %s22, %s34
      %s92 = ssub.s32 %s23, %s30
      %s93 = sor.u32 %s91, %s92
      %p94 = scmp.eq.s32.totalorder %s93, 0
      %s96 = sadd.s32 %s95, 1
      %s97 = scalar_select %p94, %s95, %s96
      %p100 = pneg %p94
      %p101 = scmp.eq.s32.totalorder %s15, 1
      %p102 = por %p100, %p101
      %p103 = scmp.ne.s32.totalorder %s95, %s98
      %p104 = scmp.eq.s32.totalorder %s15, 0
      %p105 = por %p103, %p104
      %p106 = scmp.ne.s32.totalorder %s95, %s98
      %p107 = scmp.eq.s32.totalorder %s20, 1
      %p108 = por %p106, %p107
      %p109 = scmp.ne.s32.totalorder %s98, %s99
      %p110 = scmp.eq.s32.totalorder %s20, 0
      %p111 = por %p109, %p110
      %p112 = scmp.ne.s32.totalorder %s98, %s99
      %p113 = scmp.eq.s32.totalorder %s21, 1
      %p114 = por %p112, %p113
      %p116 = scmp.ne.s32.totalorder %s99, %s115
      %p117 = scmp.eq.s32.totalorder %s21, 0
      %p118 = por %p116, %p117
      %p119 = scmp.le.s32.totalorder 1, %s15
      %p120 = scmp.lt.s32.totalorder %s15, 3
      %p121 = pnand %p119, %p120
      %p122 = pneg %p121
      // Predicated region
      $region9: #{tpu_custom_call.1} parent=5 // pred_check
        _
      $region10: #{tpu_custom_call.1} parent=5 // pred_check_branch
        %124 = sbr.rel (%p121) target = $region12
      $region11: #{tpu_custom_call.1} parent=5 // pred_region
        %s125 = ssub.s32 %s15, 1
        // Predicated region
        $region13: #{tpu_custom_call.1} parent=11 // pred_check
          %p126 = pneg %p83
        $region14: #{tpu_custom_call.1} parent=11 // pred_check_branch
          %128 = sbr.rel (%p126) target = $region16
        $region15: #{tpu_custom_call.1} parent=11 // pred_region
          %s129 = ssub.s32 1, %s24
          %131 = vsyncadd [#allocation6], 0
          %s132 = smul.addr %s129, 8
          %s133 = scalar_lea.hbm %s1, %s132
          %s135 = sshll.u32 %s133, 4
          %s136 = int_to_ptr.hbm [resolvable:$true] %s135
          %s137 = sshll.u32 [#allocation5], 4
          %s138 = int_to_ptr.vmem [resolvable:$true] %s137
          %140 = dma.hbm_to_vmem [thread:$0]  %s136, 128, %s138, [#allocation6]
        $region16: #{tpu_custom_call.1} parent=11 // pred_fallthru
          _
      $region12: #{tpu_custom_call.1} parent=5 // pred_fallthru
        _
      %p141 = scmp.lt.s32.totalorder %s15, 2
      // Predicated region
      $region17: #{tpu_custom_call.1} parent=5 // pred_check
        %p142 = pneg %p141
      $region18: #{tpu_custom_call.1} parent=5 // pred_check_branch
        %144 = sbr.rel (%p142) target = $region20
      $region19: #{tpu_custom_call.1} parent=5 // pred_region
        // Predicated region
        $region21: #{tpu_custom_call.1} parent=19 // pred_check
          %p145 = pneg %p49
        $region22: #{tpu_custom_call.1} parent=19 // pred_check_branch
          %147 = sbr.rel (%p145) target = $region24
        $region23: #{tpu_custom_call.1} parent=19 // pred_region
          %s148 = sand.u32 %s39, 1
          %s149 = scalar_lea.sflag [#allocation3], %s148
          %s150 = sand.u32 %s39, 1
          %s151 = smul.addr %s150, 8
          %s152 = scalar_lea.vmem [#allocation2], %s151
          %154 = vsyncadd %s149, 0
          %s155 = sadd.s32 %s23, %s22
          %s156 = smul.addr %s155, 8
          %s157 = scalar_lea.hbm %s0, %s156
          %s159 = sshll.u32 %s157, 4
          %s160 = int_to_ptr.hbm [resolvable:$true] %s159
          %s161 = sshll.u32 %s152, 4
          %s162 = int_to_ptr.vmem [resolvable:$true] %s161
          %164 = dma.hbm_to_vmem [thread:$0]  %s160, 128, %s162, %s149
        $region24: #{tpu_custom_call.1} parent=19 // pred_fallthru
          _
      $region20: #{tpu_custom_call.1} parent=5 // pred_fallthru
        _
      %p165 = scmp.le.s32.totalorder 1, %s15
      %p166 = scmp.lt.s32.totalorder %s15, 3
      %p167 = pnand %p165, %p166
      %p168 = pneg %p167
      // Predicated region
      $region25: #{tpu_custom_call.1} parent=5 // pred_check
        _
      $region26: #{tpu_custom_call.1} parent=5 // pred_check_branch
        %170 = sbr.rel (%p167) target = $region28
      $region27: #{tpu_custom_call.1} parent=5 // pred_region
        %s171 = ssub.s32 %s15, 1
        %s172 = sand.u32 %s42, 1
        %s173 = scalar_lea.sflag [#allocation3], %s172
        %s174 = sand.u32 %s42, 1
        %s175 = smul.addr %s174, 8
        %s176 = scalar_lea.vmem [#allocation2], %s175
        // Predicated region
        $region29: #{tpu_custom_call.1} parent=27 // pred_check
          %p177 = pneg %p55
        $region30: #{tpu_custom_call.1} parent=27 // pred_check_branch
          %179 = sbr.rel (%p177) target = $region32
        $region31: #{tpu_custom_call.1} parent=27 // pred_region
          %181 = dma.done %s173, 128
        $region32: #{tpu_custom_call.1} parent=27 // pred_fallthru
          _
        // Predicated region
        $region33: #{tpu_custom_call.1} parent=27 // pred_check
          %p182 = pneg %p83
        $region34: #{tpu_custom_call.1} parent=27 // pred_check_branch
          %184 = sbr.rel (%p182) target = $region36
        $region35: #{tpu_custom_call.1} parent=27 // pred_region
          %186 = dma.done [#allocation6], 128
        $region36: #{tpu_custom_call.1} parent=27 // pred_fallthru
          _
        %s187 = sand.u32 %s42, 1
        %s188 = scalar_lea.sflag [#allocation3], %s187
        %s189 = sand.u32 %s42, 1
        %s190 = smul.addr %s189, 8
        %s191 = scalar_lea.vmem [#allocation2], %s190
        %p192 = pneg %p55
        %p193 = pneg %p52
        %p194 = pneg %p83
        %p195 = pneg %p80
        %p196 = pneg %p111
        %p197 = pneg %p108
        %s198 = sand.u32 %s98, 1
        %s199 = scalar_lea.sflag [#allocation4], %s198
        %s200 = sand.u32 %s98, 1
        %s201 = smul.addr %s200, 8
        %s202 = scalar_lea.vmem [#allocation7], %s201
        %s203 = ssub.s32 1, %s24
        %s204 = smul.u32 %s25, 8
        %v205 = vld [vmem:[%s176] sm:$0xff]
        %v206 = vld [vmem:[#allocation5] sm:$0xff]
        %s207 = scalar_lea.vmem [#allocation5], %s204
        %v208 = vld [vmem:[%s207] sm:$0xff]
        %vm209 = vcmask 261120
        %v211 = vsel %vm209, %v205, 0
        %v214 = vsel %vm209, %v206, 0
        %216 = vmatpush.xpose.msra.mxu0 0.0
        %217 = vmatpush.xpose.msra.mxu0 0.0
        %218 = vmatpush.xpose.msra.mxu0 0.0
        %219 = vmatpush.xpose.msra.mxu0 0.0
        %220 = vmatpush.xpose.msra.mxu0 0.0
        %221 = vmatpush.xpose.msra.mxu0 0.0
        %222 = vmatpush.xpose.msra.mxu0 0.0
        %223 = vmatpush.xpose.msra.mxu0 0.0
        %224 = vmatpush.xpose.msra.mxu0 0.0
        %225 = vmatpush.xpose.msra.mxu0 0.0
        %226 = vmatpush.xpose.msra.mxu0 0.0
        %227 = vmatpush.xpose.msra.mxu0 0.0
        %228 = vmatpush.xpose.msra.mxu0 0.0
        %229 = vmatpush.xpose.msra.mxu0 0.0
        %230 = vmatpush.xpose.msra.mxu0 0.0
        %231 = vmatpush.xpose.msra.mxu0 %v214
        %232 = vmatmul.f32.gmra.mxu0 %v211
        %v233 = vpop.f32.mrf.mxu0
        %v234 = vadd.f32 0.0, %v233
        %235 = vdwg.mxu0
        %v236 = vmul.f32 %v234, 10.0
        %vm237 = vcmask 64512
        %v238 = vsel %vm237, %v236, -inf
        %239 = vmax.xlane.f32.xlu0 %v238
        %v240 = vpop.xlane.xlu0 %239
        %v241 = vsub.f32 %v236, %v240
        %v242 = vmul.f32 %v241, 1.442695
        %v243 = vpow.pop %v242
        %v244 = vsel %vm237, %v243, 0.0
        %245 = vadd.xlane.f32.xlu0 %v244
        %v246 = vpop.xlane.xlu0 %245
        %v247 = vrcp.pop %v246
        %v248 = vmul.f32 %v246, %v247
        %v249 = vsub.f32 1.0, %v248
        %v250 = vmul.f32 %v247, %v249
        %v251 = vadd.f32 %v247, %v250
        %vm252 = vweird.f32 %v246
        %vm253 = vweird.f32 %v247
        %vm254 = vmor %vm252, %vm253
        %v255 = vsel %vm254, %v247, %v251
        %v256 = vand.u32 2147483647, %v246
        %vm257 = vcmp.eq.f32.partialorder %v256, 8.507059e+37
        %v258 = vand.u32 %v246, 2147483648
        %v259 = vor.u32 1.1754944e-38, %v258
        %v260 = vsel %vm257, %v259, %v255
        %v261 = vmul.f32 %v243, %v260
        %v262 = vmin.f32 %v261, 1.0
        %v263 = vsub.f32 1.0, %v262
        %v264 = vlog2.pop %v263
        %v265 = vmul.f32 %v264, 0.6931472
        %v266 = vmax.f32 %v265, -100.0
        %v267 = vsub.f32 0.0, %v266
        %v268 = vmul.f32 %v262, -0.00052498496
        %v269 = vadd.f32 %v268, 0.0043265834
        %v270 = vmul.f32 %v269, %v262
        %v271 = vadd.f32 %v270, -0.006041145
        %v272 = vmul.f32 %v271, %v262
        %v273 = vadd.f32 %v272, -0.024495967
        %v274 = vmul.f32 %v273, %v262
        %v275 = vadd.f32 %v274, 0.033082068
        %v276 = vmul.f32 %v275, %v262
        %v277 = vadd.f32 %v276, 0.26516965
        %v278 = vmul.f32 %v277, %v262
        %v279 = vadd.f32 %v278, 0.35355332
        %v280 = vmul.f32 %v279, 0.5
        %v281 = vmul.f32 %v267, %v280
        %v282 = vsel %vm237, %v281, 0.0
        %283 = vadd.xlane.f32.xlu0 %v282
        %v284 = vpop.xlane.xlu0 %283
        %v285 = vmul.f32 %v205, %v208
        %v286 = vsel %vm209, %v285, 0.0
        %287 = vadd.xlane.f32.xlu0 %v286
        %v288 = vpop.xlane.xlu0 %287
        %v289 = vmul.f32 %v288, 10.0
        %v290 = vsub.f32 %v289, %v240
        %v291 = vmul.f32 %v290, 1.442695
        %v292 = vpow.pop %v291
        %v293 = vmul.f32 %v292, %v260
        %v294 = vmin.f32 %v293, 1.0
        %v295 = vsub.f32 1.0, %v294
        %v296 = vlog2.pop %v295
        %v297 = vmul.f32 %v296, 0.6931472
        %v298 = vmax.f32 %v297, -100.0
        %v299 = vsub.f32 0.0, %v298
        %v300 = vmul.f32 %v294, -0.00052498496
        %v301 = vadd.f32 %v300, 0.0043265834
        %v302 = vmul.f32 %v301, %v294
        %v303 = vadd.f32 %v302, -0.006041145
        %v304 = vmul.f32 %v303, %v294
        %v305 = vadd.f32 %v304, -0.024495967
        %v306 = vmul.f32 %v305, %v294
        %v307 = vadd.f32 %v306, 0.033082068
        %v308 = vmul.f32 %v307, %v294
        %v309 = vadd.f32 %v308, 0.26516965
        %v310 = vmul.f32 %v309, %v294
        %v311 = vadd.f32 %v310, 0.35355332
        %v312 = vmul.f32 %v311, 0.5
        %v313 = vmul.f32 %v299, %v312
        %v314 = vlog2.pop %v246
        %v315 = vmul.f32 %v314, 0.6931472
        %v316 = vsub.f32 %v290, %v315
        %v317 = vmax.f32 %v316, -100.0
        %v318 = vxor.u32 %v294, 2147483648
        %v319 = vmul.f32 %v318, 1.442695
        %v320 = vpow.pop %v319
        %v321 = vadd.f32 %v320, 1.0
        %v322 = vrcp.pop %v321
        %v323 = vmul.f32 %v321, %v322
        %v324 = vsub.f32 1.0, %v323
        %v325 = vmul.f32 %v322, %v324
        %v326 = vadd.f32 %v322, %v325
        %vm327 = vweird.f32 %v321
        %vm328 = vweird.f32 %v322
        %vm329 = vmor %vm327, %vm328
        %v330 = vsel %vm329, %v322, %v326
        %v331 = vand.u32 2147483647, %v321
        %vm332 = vcmp.eq.f32.partialorder %v331, 8.507059e+37
        %v333 = vand.u32 %v321, 2147483648
        %v334 = vor.u32 1.1754944e-38, %v333
        %v335 = vsel %vm332, %v334, %v330
        %v336 = vmul.f32 1.0, %v335
        %v337 = vsub.f32 1.0, %v336
        %v338 = vsub.f32 0.0, %v317
        %v339 = vrsqrt.pop %v337
        %v340 = vmul.f32 %v339, %v337
        %v341 = vmul.f32 %v340, %v339
        %v342 = vmul.f32 0.5, %v341
        %v343 = vsub.f32 1.5, %v342
        %v344 = vmul.f32 %v339, %v343
        %v345 = vmul.f32 %v337, %v344
        %vm346 = vcmp.eq.f32.partialorder %v337, inf
        %v347 = vsel %vm346, %v337, %v345
        %vm348 = vcmp.eq.f32.partialorder %v337, 0.0
        %v349 = vand.u32 %v337, 2147483648
        %v350 = vsel %vm348, %v349, %v347
        %v351 = vmul.f32 %v337, %v350
        %v352 = vmul.f32 %v351, 0.5
        %v353 = vmul.f32 %v338, %v352
        %v354 = vsub.f32 %v353, %v313
        %v355 = vadd.f32 %v284, %v354
        %v356 = vrot.slane %v355, 4
        %v357 = vadd.f32 %v355, %v356
        %v358 = vrot.slane %v357, 2
        %v359 = vadd.f32 %v357, %v358
        %v360 = vrot.slane %v359, 1
        %v361 = vadd.f32 %v359, %v360
        %362 = vst [vmem:[%s202] sm:$0xff] %v361
        %s363 = sand.u32 %s98, 1
        %s364 = scalar_lea.sflag [#allocation4], %s363
        %s365 = sand.u32 %s98, 1
        %s366 = smul.addr %s365, 8
        %s367 = scalar_lea.vmem [#allocation7], %s366
        // Predicated region
        $region37: #{tpu_custom_call.1} parent=27 // pred_check
          %p368 = pneg %p108
        $region38: #{tpu_custom_call.1} parent=27 // pred_check_branch
          %370 = sbr.rel (%p368) target = $region40
        $region39: #{tpu_custom_call.1} parent=27 // pred_region
          %372 = vsyncadd %s364, 0
          %s373 = sadd.s32 %s25, %s24
          %s374 = smul.addr %s373, 8
          %s375 = scalar_lea.hbm %s2, %s374
          %s377 = sshll.u32 %s367, 4
          %s378 = int_to_ptr.vmem [resolvable:$true] %s377
          %s379 = sshll.u32 %s375, 4
          %s380 = int_to_ptr.hbm [resolvable:$true] %s379
          %382 = dma.vmem_to_hbm [thread:$0]  %s378, 128, %s380, %s364
        $region40: #{tpu_custom_call.1} parent=27 // pred_fallthru
          _
      $region28: #{tpu_custom_call.1} parent=5 // pred_fallthru
        _
      %p383 = scmp.le.s32.totalorder 2, %s15
      // Predicated region
      $region41: #{tpu_custom_call.1} parent=5 // pred_check
        %p384 = pneg %p383
      $region42: #{tpu_custom_call.1} parent=5 // pred_check_branch
        %386 = sbr.rel (%p384) target = $region44
      $region43: #{tpu_custom_call.1} parent=5 // pred_region
        %s387 = ssub.s32 %s15, 2
        // Predicated region
        $region45: #{tpu_custom_call.1} parent=43 // pred_check
          %p388 = pneg %p114
        $region46: #{tpu_custom_call.1} parent=43 // pred_check_branch
          %390 = sbr.rel (%p388) target = $region48
        $region47: #{tpu_custom_call.1} parent=43 // pred_region
          %s391 = sand.u32 %s99, 1
          %s392 = scalar_lea.sflag [#allocation4], %s391
          %s393 = sand.u32 %s99, 1
          %s394 = smul.addr %s393, 8
          %s395 = scalar_lea.vmem [#allocation7], %s394
          %397 = dma.done %s392, 128
        $region48: #{tpu_custom_call.1} parent=43 // pred_fallthru
          _
      $region44: #{tpu_custom_call.1} parent=5 // pred_fallthru
        _
    $region6: #{tpu_custom_call.1} parent=1 // loop_footer
      %s19 = sadd.s32 1, %s15
    $region7: #{tpu_custom_call.1} parent=1 // loop_footer_branch
      %14 = sbr.rel target = $region3
    $region8: #{tpu_custom_call.1} parent=1 // loop_exit
      _
    %398 = vsyncpa [#allocation3], 1
    %s399 = scalar_lea.sflag [#allocation3], 1
    %400 = vsyncpa %s399, 1
    %401 = vsyncpa [#allocation6], 1
    %402 = vsyncpa [#allocation4], 1
    %s403 = scalar_lea.sflag [#allocation4], 1
    %404 = vsyncpa %s403, 1

// kernel: tpu_custom_call.1
$region0: #{tpu_custom_call.1}
  #allocation0 [shape = 'u32[]', space=smem, size = 0x4, offset = 0x4, fixed_abs, tag = 'smem constant byte address 0x4 - core index']
  #allocation1 [shape = 'u32[72,128]{1,0:T(1,128)}', space=vmem, size = 0x9000, scoped, tag = 'internal scratch']
  %s0 = inlined_call_operand.hbm [shape: f32[2,8,32], index: 0, kind: input, shape index: {}]
  %s1 = inlined_call_operand.hbm [shape: f32[2,8,32], index: 1, kind: input, shape index: {}]
  %s2 = inlined_call_operand.hbm [shape: f32[2,1,8,128], index: 2, kind: output, shape index: {}]
  %s3 = sld [smem:[#allocation0]]
  $region49: #{tpu_custom_call.1} parent=0
    _
  %s5 = ssub.s32 1, %s3
  %s6 = scalar_select 0, %s5, %s3
  $region1: #{tpu_custom_call.1} parent=0
    #allocation2 [shape = 'u8[8192]{0}', space=vmem, size = 0x2000, scoped, tag = 'input window, operand 0']
    #allocation3 [shape = 's32[2]{0}', space=sflag, size = 0x8, scoped, tag = 'scoped memory for tpu_custom_call.1']
    #allocation4 [shape = 's32[2]{0}', space=sflag, size = 0x8, scoped, tag = 'scoped memory for tpu_custom_call.1']
    #allocation5 [shape = 'u8[8192]{0}', space=vmem, size = 0x2000, scoped, tag = 'input window, operand 1']
    #allocation6 [shape = 's32[2]{0}', space=sflag, size = 0x8, scoped, tag = 'scoped memory for tpu_custom_call.1']
    #allocation7 [shape = 'u8[8192]{0}', space=vmem, size = 0x2000, scoped, tag = 'output window, operand 0']
    %7 = vsyncpa [#allocation3], 0
    %s8 = scalar_lea.sflag [#allocation3], 1
    %9 = vsyncpa %s8, 0
    %10 = vsyncpa [#allocation6], 0
    %s11 = scalar_lea.sflag [#allocation6], 1
    %12 = vsyncpa %s11, 0
    %13 = vsyncpa [#allocation4], 0
    %s14 = scalar_lea.sflag [#allocation4], 1
    %15 = vsyncpa %s14, 0
    loop: start=0, step=1, limit=4
    $region2: #{tpu_custom_call.1} parent=1 // loop_pre_header
      _
    $region3: #{tpu_custom_call.1} parent=1 // loop_header
      %s17 = sphi 0, %s21
      %p18 = scmp.ge.s32.totalorder %s17, 4
      %s24 = sphi 0, %s36
      %s25 = sphi 0, %s32
      %s26 = sphi 0, %s24
      %s27 = sphi 0, %s25
      %s28 = sphi 0, %s26
      %s29 = sphi 0, %s27
      %s41 = sphi 0, %s43
      %s44 = sphi 0, %s41
      %s45 = sphi 0, %s44
      %s61 = sphi 0, %s45
      %s69 = sphi 0, %s71
      %s72 = sphi 0, %s69
      %s73 = sphi 0, %s72
      %s89 = sphi 0, %s73
      %s97 = sphi 0, %s99
      %s100 = sphi 0, %s97
      %s101 = sphi 0, %s100
      %s117 = sphi 0, %s101
    $region4: #{tpu_custom_call.1} parent=1 // loop_header_branch
      %20 = sbr.rel (%p18) target = $region8
    $region5: #{tpu_custom_call.1} parent=1 // loop_body
      %s22 = ssub.s32 %s17, 1
      %s23 = ssub.s32 %s17, 2
      %s30 = sadd.s32 1, %s25
      %p31 = scmp.ge.s32.totalorder %s30, 1
      %s32 = scalar_select %p31, 0, %s30
      %s33 = sadd.s32 1, %s24
      %s34 = scalar_select %p31, %s33, %s24
      %p35 = scmp.ge.s32.totalorder %s34, 2
      %s36 = scalar_select %p35, 0, %s34
      %s37 = ssub.s32 %s24, %s36
      %s38 = ssub.s32 %s25, %s32
      %s39 = sor.u32 %s37, %s38
      %p40 = scmp.eq.s32.totalorder %s39, 0
      %s42 = sadd.s32 %s41, 1
      %s43 = scalar_select %p40, %s41, %s42
      %p46 = pneg %p40
      %p47 = scmp.eq.s32.totalorder %s17, 1
      %p48 = por %p46, %p47
      %p49 = scmp.ne.s32.totalorder %s41, %s44
      %p50 = scmp.eq.s32.totalorder %s17, 0
      %p51 = por %p49, %p50
      %p52 = scmp.ne.s32.totalorder %s41, %s44
      %p53 = scmp.eq.s32.totalorder %s22, 1
      %p54 = por %p52, %p53
      %p55 = scmp.ne.s32.totalorder %s44, %s45
      %p56 = scmp.eq.s32.totalorder %s22, 0
      %p57 = por %p55, %p56
      %p58 = scmp.ne.s32.totalorder %s44, %s45
      %p59 = scmp.eq.s32.totalorder %s23, 1
      %p60 = por %p58, %p59
      %p62 = scmp.ne.s32.totalorder %s45, %s61
      %p63 = scmp.eq.s32.totalorder %s23, 0
      %p64 = por %p62, %p63
      %s65 = ssub.s32 1, %s24
      %s66 = ssub.s32 1, %s36
      %s67 = ssub.s32 %s65, %s66
      %p68 = scmp.eq.s32.totalorder %s67, 0
      %s70 = sadd.s32 %s69, 1
      %s71 = scalar_select %p68, %s69, %s70
      %p74 = pneg %p68
      %p75 = scmp.eq.s32.totalorder %s17, 1
      %p76 = por %p74, %p75
      %p77 = scmp.ne.s32.totalorder %s69, %s72
      %p78 = scmp.eq.s32.totalorder %s17, 0
      %p79 = por %p77, %p78
      %p80 = scmp.ne.s32.totalorder %s69, %s72
      %p81 = scmp.eq.s32.totalorder %s22, 1
      %p82 = por %p80, %p81
      %p83 = scmp.ne.s32.totalorder %s72, %s73
      %p84 = scmp.eq.s32.totalorder %s22, 0
      %p85 = por %p83, %p84
      %p86 = scmp.ne.s32.totalorder %s72, %s73
      %p87 = scmp.eq.s32.totalorder %s23, 1
      %p88 = por %p86, %p87
      %p90 = scmp.ne.s32.totalorder %s73, %s89
      %p91 = scmp.eq.s32.totalorder %s23, 0
      %p92 = por %p90, %p91
      %s93 = ssub.s32 %s24, %s36
      %s94 = ssub.s32 %s25, %s32
      %s95 = sor.u32 %s93, %s94
      %p96 = scmp.eq.s32.totalorder %s95, 0
      %s98 = sadd.s32 %s97, 1
      %s99 = scalar_select %p96, %s97, %s98
      %p102 = pneg %p96
      %p103 = scmp.eq.s32.totalorder %s17, 1
      %p104 = por %p102, %p103
      %p105 = scmp.ne.s32.totalorder %s97, %s100
      %p106 = scmp.eq.s32.totalorder %s17, 0
      %p107 = por %p105, %p106
      %p108 = scmp.ne.s32.totalorder %s97, %s100
      %p109 = scmp.eq.s32.totalorder %s22, 1
      %p110 = por %p108, %p109
      %p111 = scmp.ne.s32.totalorder %s100, %s101
      %p112 = scmp.eq.s32.totalorder %s22, 0
      %p113 = por %p111, %p112
      %p114 = scmp.ne.s32.totalorder %s100, %s101
      %p115 = scmp.eq.s32.totalorder %s23, 1
      %p116 = por %p114, %p115
      %p118 = scmp.ne.s32.totalorder %s101, %s117
      %p119 = scmp.eq.s32.totalorder %s23, 0
      %p120 = por %p118, %p119
      %p121 = scmp.le.s32.totalorder 1, %s17
      %p122 = scmp.lt.s32.totalorder %s17, 3
      %p123 = pnand %p121, %p122
      %p124 = pneg %p123
      // Predicated region
      $region9: #{tpu_custom_call.1} parent=5 // pred_check
        _
      $region10: #{tpu_custom_call.1} parent=5 // pred_check_branch
        %126 = sbr.rel (%p123) target = $region12
      $region11: #{tpu_custom_call.1} parent=5 // pred_region
        %s127 = ssub.s32 %s17, 1
      $region12: #{tpu_custom_call.1} parent=5 // pred_fallthru
        _
      %p128 = scmp.lt.s32.totalorder %s17, 2
      // Predicated region
      $region13: #{tpu_custom_call.1} parent=5 // pred_check
        %p129 = pneg %p128
      $region14: #{tpu_custom_call.1} parent=5 // pred_check_branch
        %131 = sbr.rel (%p129) target = $region16
      $region15: #{tpu_custom_call.1} parent=5 // pred_region
        // Predicated region
        $region17: #{tpu_custom_call.1} parent=15 // pred_check
          %p132 = pneg %p51
        $region18: #{tpu_custom_call.1} parent=15 // pred_check_branch
          %134 = sbr.rel (%p132) target = $region20
        $region19: #{tpu_custom_call.1} parent=15 // pred_region
          %s135 = sand.u32 %s41, 1
          %s136 = scalar_lea.sflag [#allocation3], %s135
          %s137 = sand.u32 %s41, 1
          %s138 = smul.addr %s137, 8
          %s139 = scalar_lea.vmem [#allocation2], %s138
          %141 = vsyncadd %s136, 0
          %s142 = sadd.s32 %s25, %s24
          %s143 = smul.addr %s142, 8
          %s144 = scalar_lea.hbm %s0, %s143
          %s146 = sshll.u32 %s144, 4
          %s147 = int_to_ptr.hbm [resolvable:$true] %s146
          %s148 = sshll.u32 %s139, 4
          %s149 = int_to_ptr.vmem [resolvable:$true] %s148
          %151 = dma.hbm_to_vmem [thread:$0]  %s147, 128, %s149, %s136
        $region20: #{tpu_custom_call.1} parent=15 // pred_fallthru
          _
        // Predicated region
        $region21: #{tpu_custom_call.1} parent=15 // pred_check
          %p152 = pneg %p79
        $region22: #{tpu_custom_call.1} parent=15 // pred_check_branch
          %154 = sbr.rel (%p152) target = $region24
        $region23: #{tpu_custom_call.1} parent=15 // pred_region
          %s155 = sand.u32 %s69, 1
          %s156 = scalar_lea.sflag [#allocation6], %s155
          %s157 = sand.u32 %s69, 1
          %s158 = smul.addr %s157, 8
          %s159 = scalar_lea.vmem [#allocation5], %s158
          %s160 = ssub.s32 1, %s24
          %162 = vsyncadd %s156, 0
          %s163 = smul.addr %s160, 8
          %s164 = scalar_lea.hbm %s1, %s163
          %s166 = sshll.u32 %s164, 4
          %s167 = int_to_ptr.hbm [resolvable:$true] %s166
          %s168 = sshll.u32 %s159, 4
          %s169 = int_to_ptr.vmem [resolvable:$true] %s168
          %171 = dma.hbm_to_vmem [thread:$0]  %s167, 128, %s169, %s156
        $region24: #{tpu_custom_call.1} parent=15 // pred_fallthru
          _
      $region16: #{tpu_custom_call.1} parent=5 // pred_fallthru
        _
      %p172 = scmp.le.s32.totalorder 1, %s17
      %p173 = scmp.lt.s32.totalorder %s17, 3
      %p174 = pnand %p172, %p173
      %p175 = pneg %p174
      // Predicated region
      $region25: #{tpu_custom_call.1} parent=5 // pred_check
        _
      $region26: #{tpu_custom_call.1} parent=5 // pred_check_branch
        %177 = sbr.rel (%p174) target = $region28
      $region27: #{tpu_custom_call.1} parent=5 // pred_region
        %s178 = ssub.s32 %s17, 1
        %s179 = sand.u32 %s44, 1
        %s180 = scalar_lea.sflag [#allocation3], %s179
        %s181 = sand.u32 %s44, 1
        %s182 = smul.addr %s181, 8
        %s183 = scalar_lea.vmem [#allocation2], %s182
        // Predicated region
        $region29: #{tpu_custom_call.1} parent=27 // pred_check
          %p184 = pneg %p57
        $region30: #{tpu_custom_call.1} parent=27 // pred_check_branch
          %186 = sbr.rel (%p184) target = $region32
        $region31: #{tpu_custom_call.1} parent=27 // pred_region
          %188 = dma.done %s180, 128
        $region32: #{tpu_custom_call.1} parent=27 // pred_fallthru
          _
        %s189 = sand.u32 %s72, 1
        %s190 = scalar_lea.sflag [#allocation6], %s189
        %s191 = sand.u32 %s72, 1
        %s192 = smul.addr %s191, 8
        %s193 = scalar_lea.vmem [#allocation5], %s192
        // Predicated region
        $region33: #{tpu_custom_call.1} parent=27 // pred_check
          %p194 = pneg %p85
        $region34: #{tpu_custom_call.1} parent=27 // pred_check_branch
          %196 = sbr.rel (%p194) target = $region36
        $region35: #{tpu_custom_call.1} parent=27 // pred_region
          %198 = dma.done %s190, 128
        $region36: #{tpu_custom_call.1} parent=27 // pred_fallthru
          _
        %s199 = sand.u32 %s44, 1
        %s200 = scalar_lea.sflag [#allocation3], %s199
        %s201 = sand.u32 %s44, 1
        %s202 = smul.addr %s201, 8
        %s203 = scalar_lea.vmem [#allocation2], %s202
        %p204 = pneg %p57
        %p205 = pneg %p54
        %s206 = sand.u32 %s72, 1
        %s207 = scalar_lea.sflag [#allocation6], %s206
        %s208 = sand.u32 %s72, 1
        %s209 = smul.addr %s208, 8
        %s210 = scalar_lea.vmem [#allocation5], %s209
        %p211 = pneg %p85
        %p212 = pneg %p82
        %p213 = pneg %p113
        %p214 = pneg %p110
        %s215 = sand.u32 %s100, 1
        %s216 = scalar_lea.sflag [#allocation4], %s215
        %s217 = sand.u32 %s100, 1
        %s218 = smul.addr %s217, 8
        %s219 = scalar_lea.vmem [#allocation7], %s218
        %s220 = ssub.s32 1, %s26
        %s221 = smul.u32 %s27, 8
        %v222 = vld [vmem:[%s183] sm:$0xff]
        %v223 = vld [vmem:[%s193] sm:$0xff]
        %s224 = scalar_lea.vmem %s193, %s221 [#allocation5]
        %v225 = vld [vmem:[%s224] sm:$0xff]
        %vm226 = vcmask 261120
        %v228 = vsel %vm226, %v222, 0
        %v231 = vsel %vm226, %v223, 0
        %233 = vmatpush.xpose.msra.mxu0 0.0
        %234 = vmatpush.xpose.msra.mxu0 0.0
        %235 = vmatpush.xpose.msra.mxu0 0.0
        %236 = vmatpush.xpose.msra.mxu0 0.0
        %237 = vmatpush.xpose.msra.mxu0 0.0
        %238 = vmatpush.xpose.msra.mxu0 0.0
        %239 = vmatpush.xpose.msra.mxu0 0.0
        %240 = vmatpush.xpose.msra.mxu0 0.0
        %241 = vmatpush.xpose.msra.mxu0 0.0
        %242 = vmatpush.xpose.msra.mxu0 0.0
        %243 = vmatpush.xpose.msra.mxu0 0.0
        %244 = vmatpush.xpose.msra.mxu0 0.0
        %245 = vmatpush.xpose.msra.mxu0 0.0
        %246 = vmatpush.xpose.msra.mxu0 0.0
        %247 = vmatpush.xpose.msra.mxu0 0.0
        %248 = vmatpush.xpose.msra.mxu0 %v231
        %249 = vmatmul.f32.gmra.mxu0 %v228
        %v250 = vpop.f32.mrf.mxu0
        %v251 = vadd.f32 0.0, %v250
        %252 = vdwg.mxu0
        %v253 = vmul.f32 %v251, 10.0
        %vm254 = vcmask 64512
        %v255 = vsel %vm254, %v253, -inf
        %256 = vmax.xlane.f32.xlu0 %v255
        %v257 = vpop.xlane.xlu0 %256
        %v258 = vsub.f32 %v253, %v257
        %v259 = vmul.f32 %v258, 1.442695
        %v260 = vpow.pop %v259
        %v261 = vsel %vm254, %v260, 0.0
        %262 = vadd.xlane.f32.xlu0 %v261
        %v263 = vpop.xlane.xlu0 %262
        %v264 = vrcp.pop %v263
        %v265 = vmul.f32 %v263, %v264
        %v266 = vsub.f32 1.0, %v265
        %v267 = vmul.f32 %v264, %v266
        %v268 = vadd.f32 %v264, %v267
        %vm269 = vweird.f32 %v263
        %vm270 = vweird.f32 %v264
        %vm271 = vmor %vm269, %vm270
        %v272 = vsel %vm271, %v264, %v268
        %v273 = vand.u32 2147483647, %v263
        %vm274 = vcmp.eq.f32.partialorder %v273, 8.507059e+37
        %v275 = vand.u32 %v263, 2147483648
        %v276 = vor.u32 1.1754944e-38, %v275
        %v277 = vsel %vm274, %v276, %v272
        %v278 = vmul.f32 %v260, %v277
        %v279 = vmin.f32 %v278, 1.0
        %v280 = vsub.f32 1.0, %v279
        %v281 = vlog2.pop %v280
        %v282 = vmul.f32 %v281, 0.6931472
        %v283 = vmax.f32 %v282, -100.0
        %v284 = vsub.f32 0.0, %v283
        %v285 = vmul.f32 %v279, -0.00052498496
        %v286 = vadd.f32 %v285, 0.0043265834
        %v287 = vmul.f32 %v286, %v279
        %v288 = vadd.f32 %v287, -0.006041145
        %v289 = vmul.f32 %v288, %v279
        %v290 = vadd.f32 %v289, -0.024495967
        %v291 = vmul.f32 %v290, %v279
        %v292 = vadd.f32 %v291, 0.033082068
        %v293 = vmul.f32 %v292, %v279
        %v294 = vadd.f32 %v293, 0.26516965
        %v295 = vmul.f32 %v294, %v279
        %v296 = vadd.f32 %v295, 0.35355332
        %v297 = vmul.f32 %v296, 0.5
        %v298 = vmul.f32 %v284, %v297
        %v299 = vsel %vm254, %v298, 0.0
        %300 = vadd.xlane.f32.xlu0 %v299
        %v301 = vpop.xlane.xlu0 %300
        %v302 = vmul.f32 %v222, %v225
        %v303 = vsel %vm226, %v302, 0.0
        %304 = vadd.xlane.f32.xlu0 %v303
        %v305 = vpop.xlane.xlu0 %304
        %v306 = vmul.f32 %v305, 10.0
        %v307 = vsub.f32 %v306, %v257
        %v308 = vmul.f32 %v307, 1.442695
        %v309 = vpow.pop %v308
        %v310 = vmul.f32 %v309, %v277
        %v311 = vmin.f32 %v310, 1.0
        %v312 = vsub.f32 1.0, %v311
        %v313 = vlog2.pop %v312
        %v314 = vmul.f32 %v313, 0.6931472
        %v315 = vmax.f32 %v314, -100.0
        %v316 = vsub.f32 0.0, %v315
        %v317 = vmul.f32 %v311, -0.00052498496
        %v318 = vadd.f32 %v317, 0.0043265834
        %v319 = vmul.f32 %v318, %v311
        %v320 = vadd.f32 %v319, -0.006041145
        %v321 = vmul.f32 %v320, %v311
        %v322 = vadd.f32 %v321, -0.024495967
        %v323 = vmul.f32 %v322, %v311
        %v324 = vadd.f32 %v323, 0.033082068
        %v325 = vmul.f32 %v324, %v311
        %v326 = vadd.f32 %v325, 0.26516965
        %v327 = vmul.f32 %v326, %v311
        %v328 = vadd.f32 %v327, 0.35355332
        %v329 = vmul.f32 %v328, 0.5
        %v330 = vmul.f32 %v316, %v329
        %v331 = vlog2.pop %v263
        %v332 = vmul.f32 %v331, 0.6931472
        %v333 = vsub.f32 %v307, %v332
        %v334 = vmax.f32 %v333, -100.0
        %v335 = vxor.u32 %v311, 2147483648
        %v336 = vmul.f32 %v335, 1.442695
        %v337 = vpow.pop %v336
        %v338 = vadd.f32 %v337, 1.0
        %v339 = vrcp.pop %v338
        %v340 = vmul.f32 %v338, %v339
        %v341 = vsub.f32 1.0, %v340
        %v342 = vmul.f32 %v339, %v341
        %v343 = vadd.f32 %v339, %v342
        %vm344 = vweird.f32 %v338
        %vm345 = vweird.f32 %v339
        %vm346 = vmor %vm344, %vm345
        %v347 = vsel %vm346, %v339, %v343
        %v348 = vand.u32 2147483647, %v338
        %vm349 = vcmp.eq.f32.partialorder %v348, 8.507059e+37
        %v350 = vand.u32 %v338, 2147483648
        %v351 = vor.u32 1.1754944e-38, %v350
        %v352 = vsel %vm349, %v351, %v347
        %v353 = vmul.f32 1.0, %v352
        %v354 = vsub.f32 1.0, %v353
        %v355 = vsub.f32 0.0, %v334
        %v356 = vrsqrt.pop %v354
        %v357 = vmul.f32 %v356, %v354
        %v358 = vmul.f32 %v357, %v356
        %v359 = vmul.f32 0.5, %v358
        %v360 = vsub.f32 1.5, %v359
        %v361 = vmul.f32 %v356, %v360
        %v362 = vmul.f32 %v354, %v361
        %vm363 = vcmp.eq.f32.partialorder %v354, inf
        %v364 = vsel %vm363, %v354, %v362
        %vm365 = vcmp.eq.f32.partialorder %v354, 0.0
        %v366 = vand.u32 %v354, 2147483648
        %v367 = vsel %vm365, %v366, %v364
        %v368 = vmul.f32 %v354, %v367
        %v369 = vmul.f32 %v368, 0.5
        %v370 = vmul.f32 %v355, %v369
        %v371 = vsub.f32 %v370, %v330
        %v372 = vadd.f32 %v301, %v371
        %v373 = vrot.slane %v372, 4
        %v374 = vadd.f32 %v372, %v373
        %v375 = vrot.slane %v374, 2
        %v376 = vadd.f32 %v374, %v375
        %v377 = vrot.slane %v376, 1
        %v378 = vadd.f32 %v376, %v377
        %379 = vst [vmem:[%s219] sm:$0xff] %v378
        %s380 = sand.u32 %s100, 1
        %s381 = scalar_lea.sflag [#allocation4], %s380
        %s382 = sand.u32 %s100, 1
        %s383 = smul.addr %s382, 8
        %s384 = scalar_lea.vmem [#allocation7], %s383
        // Predicated region
        $region37: #{tpu_custom_call.1} parent=27 // pred_check
          %p385 = pneg %p110
        $region38: #{tpu_custom_call.1} parent=27 // pred_check_branch
          %387 = sbr.rel (%p385) target = $region40
        $region39: #{tpu_custom_call.1} parent=27 // pred_region
          %389 = vsyncadd %s381, 0
          %s390 = sadd.s32 %s27, %s26
          %s391 = smul.addr %s390, 8
          %s392 = scalar_lea.hbm %s2, %s391
          %s394 = sshll.u32 %s384, 4
          %s395 = int_to_ptr.vmem [resolvable:$true] %s394
          %s396 = sshll.u32 %s392, 4
          %s397 = int_to_ptr.hbm [resolvable:$true] %s396
          %399 = dma.vmem_to_hbm [thread:$0]  %s395, 128, %s397, %s381
        $region40: #{tpu_custom_call.1} parent=27 // pred_fallthru
          _
      $region28: #{tpu_custom_call.1} parent=5 // pred_fallthru
        _
      %p400 = scmp.le.s32.totalorder 2, %s17
      // Predicated region
      $region41: #{tpu_custom_call.1} parent=5 // pred_check
        %p401 = pneg %p400
      $region42: #{tpu_custom_call.1} parent=5 // pred_check_branch
        %403 = sbr.rel (%p401) target = $region44
      $region43: #{tpu_custom_call.1} parent=5 // pred_region
        %s404 = ssub.s32 %s17, 2
        // Predicated region
        $region45: #{tpu_custom_call.1} parent=43 // pred_check
          %p405 = pneg %p116
        $region46: #{tpu_custom_call.1} parent=43 // pred_check_branch
          %407 = sbr.rel (%p405) target = $region48
        $region47: #{tpu_custom_call.1} parent=43 // pred_region
          %s408 = sand.u32 %s101, 1
          %s409 = scalar_lea.sflag [#allocation4], %s408
          %s410 = sand.u32 %s101, 1
          %s411 = smul.addr %s410, 8
          %s412 = scalar_lea.vmem [#allocation7], %s411
          %414 = dma.done %s409, 128
        $region48: #{tpu_custom_call.1} parent=43 // pred_fallthru
          _
      $region44: #{tpu_custom_call.1} parent=5 // pred_fallthru
        _
    $region6: #{tpu_custom_call.1} parent=1 // loop_footer
      %s21 = sadd.s32 1, %s17
    $region7: #{tpu_custom_call.1} parent=1 // loop_footer_branch
      %16 = sbr.rel target = $region3
    $region8: #{tpu_custom_call.1} parent=1 // loop_exit
      _
    %415 = vsyncpa [#allocation3], 1
    %s416 = scalar_lea.sflag [#allocation3], 1
    %417 = vsyncpa %s416, 1
    %418 = vsyncpa [#allocation6], 1
    %s419 = scalar_lea.sflag [#allocation6], 1
    %420 = vsyncpa %s419, 1
    %421 = vsyncpa [#allocation4], 1
    %s422 = scalar_lea.sflag [#allocation4], 1
    %423 = vsyncpa %s422, 1

</llo_original>
